<compile_context>
chip_gen: v7x
topology: tpu7x:2x2x1
jax: 0.10.0
libtpu: 0.0.40
codegen_flags: <defaults>
</compile_context>

<pallas_src>
import functools
import numpy as np
import jax
import jax.numpy as jnp
from jax import lax
from jax.experimental import pallas as pl
from jax.experimental.pallas import tpu as pltpu

MXU_DTYPE = jnp.bfloat16          # MXU operands (f32 accumulation)
EMB_DTYPE = jnp.bfloat16          # embedding tables + ly intermediate
VMEM_TABLE_BYTES = 8 * 1024 * 1024  # stacked-table size below which we keep it in VMEM


# ----------------------------------------------------------------------------
# helpers
# ----------------------------------------------------------------------------
def _round_up(x, m):
    return ((x + m - 1) // m) * m


def _batch_tiling(B, max_tile=256):
    """Padded batch + batch tile (multiples of 8, tile divides padded batch).
    max_tile=256 keeps double-buffered footprints comfortable on v7x (64 MiB VMEM)."""
    Bp = _round_up(B, 8)
    if Bp <= max_tile:
        return Bp, Bp
    Bp = _round_up(B, max_tile)
    return Bp, max_tile


# ----------------------------------------------------------------------------
# parameter construction (mirrors create_mlp / create_emb init, torch layout)
# ----------------------------------------------------------------------------
def make_mlp_params(key, ln, dtype=jnp.float32):
    """W ~ N(0, sqrt(2/(m+n))) of shape (out,in); b ~ N(0, sqrt(1/m)) of shape (out,)."""
    params = []
    for i in range(len(ln) - 1):
        n, m = int(ln[i]), int(ln[i + 1])
        key, kw, kb = jax.random.split(key, 3)
        W = jax.random.normal(kw, (m, n), dtype) * np.sqrt(2.0 / (m + n))
        b = jax.random.normal(kb, (m,), dtype) * np.sqrt(1.0 / m)
        params.append((W, b))
    return key, params


def make_emb_params(key, ln_emb, m_spa, dtype=jnp.float32):
    """W ~ U(-sqrt(1/n), sqrt(1/n)) of shape (n, m_spa)."""
    tables = []
    for n in ln_emb:
        key, k = jax.random.split(key)
        bound = np.sqrt(1.0 / n)
        tables.append(jax.random.uniform(k, (int(n), int(m_spa)), dtype,
                                         -bound, bound))
    return key, tables


def prep_mlp_params(params):
    """torch-layout (W (out,in), b (out,)) -> kernel operand list.
    Matmul layers: bf16 (in,out) weight (pre-cast HERE, not per grid step) +
    f32 (1,out) bias.  out==1 layers stay f32 for the VPU reduce + f32 sigmoid."""
    ops, flags = [], []
    for (W, b) in params:
        out_d, in_d = int(W.shape[0]), int(W.shape[1])
        if out_d == 1:
            ops += [jnp.asarray(W, jnp.float32).reshape(1, in_d),
                    jnp.asarray(b, jnp.float32).reshape(1, 1)]
            flags.append(True)
        else:
            ops += [jnp.asarray(W, jnp.float32).T.astype(MXU_DTYPE),
                    jnp.asarray(b, jnp.float32).reshape(1, out_d)]
            flags.append(False)
    return ops, tuple(flags)


def prep_top_params(params):
    """Like prep_mlp_params, plus zero-pad the first layer's K (= m_spa + npairs,
    e.g. 22/479) up to a multiple of 8 so the MXU load stays aligned."""
    ops, flags = prep_mlp_params(params)
    k_pad = 0
    if not flags[0]:
        in_d = int(params[0][0].shape[1])
        k_pad = _round_up(in_d, 8) - in_d
        if k_pad:
            wt = ops[0]
            ops[0] = jnp.concatenate(
                [wt, jnp.zeros((k_pad, wt.shape[1]), wt.dtype)], axis=0)
    return ops, flags, k_pad


def stack_tables(emb_tables):
    """Stack all tables (bf16), each padded with zero rows to a multiple of 8 so
    static in-kernel slices stay sublane-aligned; trailing zero rows are the
    'pad row' target for the HBM gather path."""
    blocks, meta, base = [], [], 0
    m = int(emb_tables[0].shape[1])
    for t in emb_tables:
        rows = int(t.shape[0])
        rp = _round_up(rows, 8)
        tb = jnp.asarray(t, EMB_DTYPE)
        if rp > rows:
            tb = jnp.concatenate([tb, jnp.zeros((rp - rows, m), EMB_DTYPE)], 0)
        blocks.append(tb)
        meta.append((base, rp))
        base += rp
    blocks.append(jnp.zeros((8, m), EMB_DTYPE))
    pad_row = base
    return jnp.concatenate(blocks, axis=0), tuple(meta), pad_row


def bags_to_padded_local_indices(indices, offsets, B, Bp, max_nnz):
    """(indices, offsets) EmbeddingBag input -> (Bp, max_nnz) padded LOCAL row ids,
    -1 for padded / missing slots.  NOTE: bags longer than max_nnz would be
    truncated -- the caller must guarantee max_nnz >= longest bag."""
    total = indices.shape[0]
    off = jnp.concatenate([offsets.astype(jnp.int32),
                           jnp.array([total], dtype=jnp.int32)])
    lengths = off[1:] - off[:-1]
    j = jnp.arange(max_nnz, dtype=jnp.int32)[None, :]
    pos = off[:B, None] + j
    valid = j < lengths[:, None]
    pos = jnp.where(valid, pos, 0)
    g = jnp.take(indices.astype(jnp.int32), pos, axis=0)
    g = jnp.where(valid, g, -1)
    if Bp > B:
        g = jnp.concatenate([g, jnp.full((Bp - B, max_nnz), -1, jnp.int32)], 0)
    return g


# ----------------------------------------------------------------------------
# Kernel E (fast path): VMEM-resident table, one-hot-count matmul bag sums
# ----------------------------------------------------------------------------
def _emb_onehot_kernel(idx_ref, tbl_ref, out_ref, *, table_meta, max_nnz):
    # idx_ref: (TB, num_tables*max_nnz) int32 per-table LOCAL row ids, -1 = pad.
    # tbl_ref: whole stacked table (rows_padded, m) bf16, resident in VMEM.
    # out_ref: (TB, num_tables*m) bf16, lane-dense.
    idx = idx_ref[...]
    tb = idx.shape[0]
    cols = []
    for k, (base, rows) in enumerate(table_meta):            # static unroll
        iota = lax.broadcasted_iota(jnp.int32, (tb, rows), 1)
        counts = jnp.zeros((tb, rows), jnp.float32)
        for e in range(max_nnz):                             # static unroll
            c = k * max_nnz + e
            counts += (iota == idx[:, c:c + 1]).astype(jnp.float32)
        # bag-sum == count matrix @ table on the MXU (duplicates handled exactly)
        y = jnp.dot(counts.astype(MXU_DTYPE), tbl_ref[base:base + rows, :],
                    preferred_element_type=jnp.float32)       # (TB, m)
        cols.append(y)
    out_ref[...] = jnp.concatenate(cols, axis=1).astype(out_ref.dtype)


def emb_onehot_vmem(idx_local, stacked_tbl, table_meta, Bp, max_nnz, m_spa, tile_b):
    num_tables = len(table_meta)
    kern = functools.partial(_emb_onehot_kernel, table_meta=table_meta,
                             max_nnz=max_nnz)
    return pl.pallas_call(
        kern,
        grid=(Bp // tile_b,),
        in_specs=[pl.BlockSpec((tile_b, num_tables * max_nnz), lambda i: (i, 0)),
                  pl.BlockSpec(stacked_tbl.shape, lambda i: (0, 0))],
        out_specs=pl.BlockSpec((tile_b, num_tables * m_spa), lambda i: (i, 0)),
        out_shape=jax.ShapeDtypeStruct((Bp, num_tables * m_spa), EMB_DTYPE),
        compiler_params=pltpu.CompilerParams(dimension_semantics=("parallel",)),
    )(idx_local, stacked_tbl)


# ----------------------------------------------------------------------------
# Kernel E (big-table path): HBM-resident table, double-buffered row-DMA gather
# ----------------------------------------------------------------------------
def _emb_gather_kernel(idx_ref, tbl_ref, out_ref, row_buf, sem, *,
                       bag_blk, num_tables, max_nnz, m_spa, bags_total):
    # idx_ref : SMEM (max_nnz*num_tables*Bp,) int32 GLOBAL row ids, ordered
    #           (nnz-position, table, bag); padded slots hit the zero pad rows.
    # tbl_ref : HBM-resident stacked table (R_total, m_spa) bf16.
    # out_ref : (bag_blk, num_tables*m_spa) lane-dense bf16 block.
    # row_buf : (2*n_rows, m_spa) double-buffered gather scratch.
    bb = pl.program_id(0)
    nblocks = pl.num_programs(0)
    n2 = num_tables * bag_blk                 # rows per nnz position per block
    n_rows = max_nnz * n2                     # rows gathered per block

    def issue_block(blk, slot):
        # Every copy is exactly one (1, m_spa) row on the slot's DMA semaphore;
        # the matching number of same-shaped waits below drains it.
        buf_off = slot * n_rows
        for j in range(max_nnz):              # static
            for k in range(num_tables):       # static
                src_base = (j * num_tables + k) * bags_total + blk * bag_blk
                dst_base = buf_off + j * n2 + k * bag_blk

                def issue_one(b, src_base=src_base, dst_base=dst_base):
                    r = idx_ref[src_base + b]
                    pltpu.make_async_copy(
                        tbl_ref.at[pl.ds(r, 1), :],
                        row_buf.at[pl.ds(dst_base + b, 1), :],
                        sem.at[slot]).start()

                if bag_blk <= 256:            # static unroll for LLO visibility
                    for b in range(bag_blk):
                        issue_one(b)
                else:
                    @pl.loop(0, bag_blk)
                    def _(b):
                        issue_one(b)

    # prime the pipeline, then always prefetch the *next* bag block (P4 pattern)
    @pl.when(bb == 0)
    def _():
        issue_block(0, 0)

    @pl.when(bb + 1 < nblocks)
    def _():
        issue_block(bb + 1, (bb + 1) % 2)

    slot = bb % 2

    def wait_one():
        pltpu.make_async_copy(tbl_ref.at[pl.ds(0, 1), :],
                              row_buf.at[pl.ds(0, 1), :],
                              sem.at[slot]).wait()

    if n_rows <= 512:
        for _ in range(n_rows):
            wait_one()
    else:
        @pl.loop(0, n_rows)
        def _(b):
            wait_one()

    start = pl.multiple_of(slot * n_rows, 8)
    rows = row_buf[pl.ds(start, n_rows), :].astype(jnp.float32)   # (n_rows, m)
    # bag sums: nnz positions are contiguous aligned (n2, m) slabs -> plain adds
    bags = rows[0:n2, :]
    for j in range(1, max_nnz):
        bags = bags + rows[j * n2:(j + 1) * n2, :]
    # lane-dense output: per-table (bag_blk, m) slabs concatenated along lanes
    cols = [bags[k * bag_blk:(k + 1) * bag_blk, :] for k in range(num_tables)]
    out_ref[...] = jnp.concatenate(cols, axis=1).astype(out_ref.dtype)
    # TODO(synk): dedupe repeated row ids within a bag block before issuing DMAs.


def emb_gather_hbm(flat_idx, stacked_tbl, num_tables, Bp, max_nnz, m_spa, bag_blk):
    n_rows = max_nnz * num_tables * bag_blk
    kern = functools.partial(_emb_gather_kernel, bag_blk=bag_blk,
                             num_tables=num_tables, max_nnz=max_nnz,
                             m_spa=m_spa, bags_total=Bp)
    grid_spec = pltpu.PrefetchScalarGridSpec(
        num_scalar_prefetch=1,
        grid=(Bp // bag_blk,),
        in_specs=[pl.BlockSpec(memory_space=pl.ANY)],       # table stays in HBM
        out_specs=pl.BlockSpec((bag_blk, num_tables * m_spa),
                               lambda bb, idx: (bb, 0)),
        scratch_shapes=[
            pltpu.VMEM((2 * n_rows, m_spa), stacked_tbl.dtype),
            pltpu.SemaphoreType.DMA((2,)),
        ],
    )
    return pl.pallas_call(
        kern, grid_spec=grid_spec,
        out_shape=jax.ShapeDtypeStruct((Bp, num_tables * m_spa), EMB_DTYPE),
        compiler_params=pltpu.CompilerParams(
            # cross-step prefetch carries state -> keep the axis sequential
            dimension_semantics=("arbitrary",)),
    )(flat_idx, stacked_tbl)


# ----------------------------------------------------------------------------
# Kernel F: fused bottom MLP -> dot interaction -> top MLP (+ clamp)
# ----------------------------------------------------------------------------
def _mlp_chain(h, wb, n_layers, sigmoid_layer, reduce_flags):
    for i in range(n_layers):
        wt = wb[2 * i][...]
        b = wb[2 * i + 1][...]
        if reduce_flags[i]:
            # 1-wide layer: f32 VPU multiply + lane reduce (MXU would idle at N=1)
            y = jnp.sum(h * wt, axis=1, keepdims=True) + b
        else:
            y = jnp.dot(h.astype(MXU_DTYPE), wt,
                        preferred_element_type=jnp.float32) + b
        h = jax.nn.sigmoid(y) if i == sigmoid_layer else jnp.maximum(y, 0.0)
    return h


def _dlrm_fused_kernel(x_ref, ly_ref, sel_ref, *rest,
                       n_bot, n_top, sigmoid_bot, sigmoid_top,
                       bot_flags, top_flags, num_tables, m_spa, pairs,
                       k_pad, loss_threshold):
    o_ref = rest[-1]
    wb = rest[:-1]
    bot_wb = wb[:2 * n_bot]
    top_wb = wb[2 * n_bot:]

    # bottom MLP (intermediates never leave vregs/VMEM)
    x = _mlp_chain(x_ref[...], bot_wb, n_bot, sigmoid_bot, bot_flags)  # (TB, m) f32

    # dot interaction: concat per-pair operands once, one multiply, one summing
    # matmul -> (TB, npairs); no per-pair 1-lane concats.
    ly = ly_ref[...].astype(jnp.float32)                               # (TB, nt*m)
    feats = [x] + [ly[:, k * m_spa:(k + 1) * m_spa] for k in range(num_tables)]
    a = jnp.concatenate([feats[i] for (i, _) in pairs], axis=1)        # (TB, P*m)
    bm = jnp.concatenate([feats[j] for (_, j) in pairs], axis=1)       # (TB, P*m)
    z = jnp.dot(a * bm, sel_ref[...],
                preferred_element_type=jnp.float32)                    # (TB, P)
    h = jnp.concatenate([x, z], axis=1)
    if k_pad:
        h = jnp.concatenate(
            [h, jnp.zeros((h.shape[0], k_pad), h.dtype)], axis=1)

    # top MLP (+ optional clamp); final layer + sigmoid stay f32
    p = _mlp_chain(h, top_wb, n_top, sigmoid_top, top_flags)
    if 0.0 < loss_threshold < 1.0:
        p = jnp.clip(p, loss_threshold, 1.0 - loss_threshold)
    o_ref[...] = p.astype(o_ref.dtype)


def dlrm_fused_mlps(x_p, ly_flat, sel, bot_ops, bot_flags, top_ops, top_flags,
                    sigmoid_bot, sigmoid_top, num_tables, m_spa, pairs, k_pad,
                    loss_threshold, tile_b, d_out):
    Bp, d0 = x_p.shape
    lyw = ly_flat.shape[1]
    in_specs = [pl.BlockSpec((tile_b, d0), lambda i: (i, 0)),
                pl.BlockSpec((tile_b, lyw), lambda i: (i, 0)),
                pl.BlockSpec(sel.shape, lambda i: (0, 0))]
    for op in list(bot_ops) + list(top_ops):
        in_specs.append(pl.BlockSpec(op.shape, lambda i: (0, 0)))
    kern = functools.partial(
        _dlrm_fused_kernel,
        n_bot=len(bot_flags), n_top=len(top_flags),
        sigmoid_bot=sigmoid_bot, sigmoid_top=sigmoid_top,
        bot_flags=bot_flags, top_flags=top_flags,
        num_tables=num_tables, m_spa=m_spa, pairs=pairs,
        k_pad=k_pad, loss_threshold=loss_threshold)
    return pl.pallas_call(
        kern,
        grid=(Bp // tile_b,),
        in_specs=in_specs,
        out_specs=pl.BlockSpec((tile_b, d_out), lambda i: (i, 0)),
        out_shape=jax.ShapeDtypeStruct((Bp, d_out), jnp.float32),
        compiler_params=pltpu.CompilerParams(dimension_semantics=("parallel",)),
    )(x_p, ly_flat, sel, *bot_ops, *top_ops)


# ----------------------------------------------------------------------------
# DLRM forward (sequential_forward semantics)
# ----------------------------------------------------------------------------
def dlrm_forward(dense_x, lS_o, lS_i, bot_params, top_params, emb_tables,
                 max_nnz, sigmoid_bot=-1, sigmoid_top=-1,
                 arch_interaction_itself=False, loss_threshold=0.0,
                 force_hbm_gather=False):
    B, _ = dense_x.shape
    num_tables = len(emb_tables)
    m_spa = int(emb_tables[0].shape[1])
    assert int(bot_params[-1][0].shape[0]) == m_spa
    Bp, TB = _batch_tiling(B)

    x_p = dense_x if Bp == B else jnp.pad(dense_x, ((0, Bp - B), (0, 0)))

    stacked, table_meta, pad_row = stack_tables(emb_tables)
    loc = jnp.stack(
        [bags_to_padded_local_indices(lS_i[k], lS_o[k], B, Bp, max_nnz)
         for k in range(num_tables)], axis=1)                  # (Bp, nt, max_nnz)

    tbl_bytes = stacked.size * stacked.dtype.itemsize
    if tbl_bytes <= VMEM_TABLE_BYTES and not force_hbm_gather:
        idx_local = loc.reshape(Bp, num_tables * max_nnz)
        ly_flat = emb_onehot_vmem(idx_local, stacked, table_meta, Bp,
                                  max_nnz, m_spa, TB)
    else:
        bases = jnp.array([m[0] for m in table_meta],
                          jnp.int32).reshape(1, num_tables, 1)
        glb = jnp.where(loc >= 0, loc + bases, pad_row).astype(jnp.int32)
        flat_idx = jnp.transpose(glb, (2, 1, 0)).reshape(-1)   # (nnz, tbl, bag)
        per_bag = num_tables * max_nnz
        bag_blk = TB
        while (bag_blk > 8 and bag_blk % 16 == 0 and
               bag_blk * per_bag * m_spa * 2 > (2 << 20)):
            bag_blk //= 2
        ly_flat = emb_gather_hbm(flat_idx, stacked, num_tables, Bp,
                                 max_nnz, m_spa, bag_blk)

    nf = num_tables + 1
    off = 1 if arch_interaction_itself else 0
    pairs = tuple((i, j) for i in range(nf) for j in range(i + off))
    assert int(top_params[0][0].shape[1]) == m_spa + len(pairs)

    bot_ops, bot_flags = prep_mlp_params(bot_params)
    top_ops, top_flags, k_pad = prep_top_params(top_params)
    sel = jnp.asarray(np.kron(np.eye(len(pairs), dtype=np.float32),
                              np.ones((m_spa, 1), np.float32)))
    d_out = int(top_params[-1][0].shape[0])

    p = dlrm_fused_mlps(x_p, ly_flat, sel, bot_ops, bot_flags, top_ops,
                        top_flags, sigmoid_bot, sigmoid_top, num_tables, m_spa,
                        pairs, k_pad, loss_threshold, TB, d_out)
    return p[:B]


# ----------------------------------------------------------------------------
# Pure NumPy reference (f64) for the tolerance check
# ----------------------------------------------------------------------------
def dlrm_reference_np(dense_x, lS_o, lS_i, bot_params, top_params, emb_tables,
                      sigmoid_bot, sigmoid_top, arch_interaction_itself,
                      loss_threshold):
    def mlp(h, params, sig):
        for i, (W, b) in enumerate(params):
            h = h @ np.asarray(W, np.float64).T + np.asarray(b, np.float64)
            h = 1.0 / (1.0 + np.exp(-h)) if i == sig else np.maximum(h, 0.0)
        return h

    x = mlp(np.asarray(dense_x, np.float64), bot_params, sigmoid_bot)
    B = x.shape[0]
    ly = []
    for k, tbl in enumerate(emb_tables):
        t = np.asarray(tbl, np.float64)
        idx = np.asarray(lS_i[k])
        off = np.asarray(lS_o[k])
        ends = np.concatenate([off[1:], [idx.shape[0]]])
        ly.append(np.stack([t[idx[off[b]:ends[b]]].sum(axis=0)
                            for b in range(B)]))
    T = np.stack([x] + ly, axis=1)
    Z = np.einsum('bnd,bmd->bnm', T, T)
    ni = T.shape[1]
    offs = 1 if arch_interaction_itself else 0
    li = [i for i in range(ni) for j in range(i + offs)]
    lj = [j for i in range(ni) for j in range(i + offs)]
    p = mlp(np.concatenate([x, Z[:, li, lj]], axis=1), top_params, sigmoid_top)
    if 0.0 < loss_threshold < 1.0:
        p = np.clip(p, loss_threshold, 1.0 - loss_threshold)
    return p


# ----------------------------------------------------------------------------
# Driver
# ----------------------------------------------------------------------------
if __name__ == "__main__":
    m_spa = 16
    ln_bot = [8, 32, 16]
    ln_emb = [20, 30, 40]
    nf = len(ln_emb) + 1
    npairs = nf * (nf - 1) // 2
    ln_top = [m_spa + npairs, 32, 1]
    sigmoid_top = len(ln_top) - 2
    B = 4
    nnz = 2                                   # indices per sample per table

    key = jax.random.PRNGKey(0)
    key, bot_params = make_mlp_params(key, ln_bot)
    key, top_params = make_mlp_params(key, ln_top)
    key, emb_tables = make_emb_params(key, ln_emb, m_spa)

    key, kx = jax.random.split(key)
    dense_x = jax.random.normal(kx, (B, ln_bot[0]), jnp.float32)

    lS_i, lS_o = [], []
    for n in ln_emb:
        key, ki = jax.random.split(key)
        lS_i.append(jax.random.randint(ki, (B * nnz,), 0, n, dtype=jnp.int32))
        lS_o.append(jnp.arange(B, dtype=jnp.int32) * nnz)

    # max_nnz must cover the longest bag (otherwise the bag would be truncated)
    for k in range(len(ln_emb)):
        off = np.asarray(lS_o[k])
        lens = np.diff(np.concatenate([off, [int(lS_i[k].shape[0])]]))
        assert lens.max() <= nnz

    common = dict(max_nnz=nnz, sigmoid_bot=-1, sigmoid_top=sigmoid_top,
                  arch_interaction_itself=False, loss_threshold=0.0)
    fwd_vmem = jax.jit(functools.partial(dlrm_forward, force_hbm_gather=False,
                                         **common))
    fwd_hbm = jax.jit(functools.partial(dlrm_forward, force_hbm_gather=True,
                                        **common))

    out_v = jax.block_until_ready(
        fwd_vmem(dense_x, lS_o, lS_i, bot_params, top_params, emb_tables))
    out_h = jax.block_until_ready(
        fwd_hbm(dense_x, lS_o, lS_i, bot_params, top_params, emb_tables))

    ref = dlrm_reference_np(dense_x, lS_o, lS_i, bot_params, top_params,
                            emb_tables, -1, sigmoid_top, False, 0.0)

    assert out_v.shape == (B, ln_top[-1]), out_v.shape
    assert bool(np.all(np.isfinite(np.asarray(out_v))))
    # VMEM one-hot path and HBM DMA-gather path must agree (both bf16 tables)
    np.testing.assert_allclose(np.asarray(out_v), np.asarray(out_h),
                               atol=1e-5, rtol=0.0)
    # bf16 tables/MXU vs f64 reference: expect ~1e-2-level agreement
    np.testing.assert_allclose(np.asarray(out_v), ref, atol=5e-2, rtol=0.0)
    print("KERNEL_OK")
</pallas_src>

<mosaic_0001>
module attributes {stable_mosaic.version = 11 : i64} {
  func.func @_emb_onehot_kernel(%arg0: i32, %arg1: memref<8x6xi32, #tpu.memory_space<vmem>>, %arg2: memref<104x16xbf16, #tpu.memory_space<vmem>>, %arg3: memref<8x48xbf16, #tpu.memory_space<vmem>>) attributes {dimension_semantics = [#tpu.dimension_semantics<parallel>], iteration_bounds = array<i64: 1>, scalar_prefetch = 0 : i64, scratch_operands = 0 : i64, tpu.core_type = #tpu.core_type<tc>, window_params = [{transform_indices = @transform_0, window_bounds = array<i64: 8, 6>}, {pipeline_mode = #tpu.pipeline_mode<synchronous>, transform_indices = @transform_1, window_bounds = array<i64: 104, 16>}, {transform_indices = @transform_2, window_bounds = array<i64: 8, 48>}]} {
    %c0 = arith.constant 0 : index
    %c0_0 = arith.constant 0 : index
    %0 = vector.load %arg1[%c0, %c0_0] : memref<8x6xi32, #tpu.memory_space<vmem>>, vector<8x6xi32>
    %1 = tpu.iota {dimensions = array<i32: 1>} : vector<8x24xi32>
    %cst = arith.constant 0.000000e+00 : f32
    %2 = vector.broadcast %cst : f32 to vector<8x24xf32>
    %3 = vector.extract_strided_slice %0 {offsets = [0, 0], sizes = [8, 1], strides = [1, 1]} : vector<8x6xi32> to vector<8x1xi32>
    %4 = vector.broadcast %3 : vector<8x1xi32> to vector<8x24xi32>
    %5 = arith.cmpi eq, %1, %4 : vector<8x24xi32>
    %6 = arith.extui %5 : vector<8x24xi1> to vector<8x24xi32>
    %7 = arith.sitofp %6 : vector<8x24xi32> to vector<8x24xf32>
    %8 = arith.addf %2, %7 : vector<8x24xf32>
    %9 = vector.extract_strided_slice %0 {offsets = [0, 1], sizes = [8, 1], strides = [1, 1]} : vector<8x6xi32> to vector<8x1xi32>
    %10 = vector.broadcast %9 : vector<8x1xi32> to vector<8x24xi32>
    %11 = arith.cmpi eq, %1, %10 : vector<8x24xi32>
    %12 = arith.extui %11 : vector<8x24xi1> to vector<8x24xi32>
    %13 = arith.sitofp %12 : vector<8x24xi32> to vector<8x24xf32>
    %14 = arith.addf %8, %13 : vector<8x24xf32>
    %15 = arith.truncf %14 : vector<8x24xf32> to vector<8x24xbf16>
    %c0_1 = arith.constant 0 : index
    %c0_2 = arith.constant 0 : index
    %16 = vector.load %arg2[%c0_1, %c0_2] : memref<104x16xbf16, #tpu.memory_space<vmem>>, vector<24x16xbf16>
    %cst_3 = arith.constant dense<0.000000e+00> : vector<8x16xf32>
    %17 = tpu.matmul %15, %16, %cst_3 {dimension_numbers = #tpu.dot_dimension_numbers<[1], [0], [0], [1], [0, 0, 1, 1], [], []>} : vector<8x24xbf16>, vector<24x16xbf16>, vector<8x16xf32> -> vector<8x16xf32>
    %18 = tpu.iota {dimensions = array<i32: 1>} : vector<8x32xi32>
    %cst_4 = arith.constant 0.000000e+00 : f32
    %19 = vector.broadcast %cst_4 : f32 to vector<8x32xf32>
    %20 = vector.extract_strided_slice %0 {offsets = [0, 2], sizes = [8, 1], strides = [1, 1]} : vector<8x6xi32> to vector<8x1xi32>
    %21 = vector.broadcast %20 : vector<8x1xi32> to vector<8x32xi32>
    %22 = arith.cmpi eq, %18, %21 : vector<8x32xi32>
    %23 = arith.extui %22 : vector<8x32xi1> to vector<8x32xi32>
    %24 = arith.sitofp %23 : vector<8x32xi32> to vector<8x32xf32>
    %25 = arith.addf %19, %24 : vector<8x32xf32>
    %26 = vector.extract_strided_slice %0 {offsets = [0, 3], sizes = [8, 1], strides = [1, 1]} : vector<8x6xi32> to vector<8x1xi32>
    %27 = vector.broadcast %26 : vector<8x1xi32> to vector<8x32xi32>
    %28 = arith.cmpi eq, %18, %27 : vector<8x32xi32>
    %29 = arith.extui %28 : vector<8x32xi1> to vector<8x32xi32>
    %30 = arith.sitofp %29 : vector<8x32xi32> to vector<8x32xf32>
    %31 = arith.addf %25, %30 : vector<8x32xf32>
    %32 = arith.truncf %31 : vector<8x32xf32> to vector<8x32xbf16>
    %c24 = arith.constant 24 : index
    %c0_5 = arith.constant 0 : index
    %33 = vector.load %arg2[%c24, %c0_5] : memref<104x16xbf16, #tpu.memory_space<vmem>>, vector<32x16xbf16>
    %cst_6 = arith.constant dense<0.000000e+00> : vector<8x16xf32>
    %34 = tpu.matmul %32, %33, %cst_6 {dimension_numbers = #tpu.dot_dimension_numbers<[1], [0], [0], [1], [0, 0, 1, 1], [], []>} : vector<8x32xbf16>, vector<32x16xbf16>, vector<8x16xf32> -> vector<8x16xf32>
    %35 = tpu.iota {dimensions = array<i32: 1>} : vector<8x40xi32>
    %cst_7 = arith.constant 0.000000e+00 : f32
    %36 = vector.broadcast %cst_7 : f32 to vector<8x40xf32>
    %37 = vector.extract_strided_slice %0 {offsets = [0, 4], sizes = [8, 1], strides = [1, 1]} : vector<8x6xi32> to vector<8x1xi32>
    %38 = vector.broadcast %37 : vector<8x1xi32> to vector<8x40xi32>
    %39 = arith.cmpi eq, %35, %38 : vector<8x40xi32>
    %40 = arith.extui %39 : vector<8x40xi1> to vector<8x40xi32>
    %41 = arith.sitofp %40 : vector<8x40xi32> to vector<8x40xf32>
    %42 = arith.addf %36, %41 : vector<8x40xf32>
    %43 = vector.extract_strided_slice %0 {offsets = [0, 5], sizes = [8, 1], strides = [1, 1]} : vector<8x6xi32> to vector<8x1xi32>
    %44 = vector.broadcast %43 : vector<8x1xi32> to vector<8x40xi32>
    %45 = arith.cmpi eq, %35, %44 : vector<8x40xi32>
    %46 = arith.extui %45 : vector<8x40xi1> to vector<8x40xi32>
    %47 = arith.sitofp %46 : vector<8x40xi32> to vector<8x40xf32>
    %48 = arith.addf %42, %47 : vector<8x40xf32>
    %49 = arith.truncf %48 : vector<8x40xf32> to vector<8x40xbf16>
    %c56 = arith.constant 56 : index
    %c0_8 = arith.constant 0 : index
    %50 = vector.load %arg2[%c56, %c0_8] : memref<104x16xbf16, #tpu.memory_space<vmem>>, vector<40x16xbf16>
    %cst_9 = arith.constant dense<0.000000e+00> : vector<8x16xf32>
    %51 = tpu.matmul %49, %50, %cst_9 {dimension_numbers = #tpu.dot_dimension_numbers<[1], [0], [0], [1], [0, 0, 1, 1], [], []>} : vector<8x40xbf16>, vector<40x16xbf16>, vector<8x16xf32> -> vector<8x16xf32>
    %52 = tpu.concatenate %17, %34, %51 in 1 : vector<8x16xf32>, vector<8x16xf32>, vector<8x16xf32> -> vector<8x48xf32>
    %53 = arith.truncf %52 : vector<8x48xf32> to vector<8x48xbf16>
    %c0_10 = arith.constant 0 : index
    %c0_11 = arith.constant 0 : index
    %54 = vector.load %arg3[%c0_10, %c0_11] : memref<8x48xbf16, #tpu.memory_space<vmem>>, vector<8x48xbf16>
    tpu.vector_store %arg3[%c0_10, %c0_11], %53 {strides = array<i32>} : memref<8x48xbf16, #tpu.memory_space<vmem>>, vector<8x48xbf16>,
    return
  }
  func.func @transform_0(%arg0: i32) -> (i32, i32) {
    %c0_i32 = arith.constant 0 : i32
    %c0_i32_0 = arith.constant 0 : i32
    return %arg0, %c0_i32 : i32, i32
  }
  func.func @transform_1(%arg0: i32) -> (i32, i32) {
    %c0_i32 = arith.constant 0 : i32
    %c0_i32_0 = arith.constant 0 : i32
    %c0_i32_1 = arith.constant 0 : i32
    return %c0_i32, %c0_i32_0 : i32, i32
  }
  func.func @transform_2(%arg0: i32) -> (i32, i32) {
    %c0_i32 = arith.constant 0 : i32
    %c0_i32_0 = arith.constant 0 : i32
    return %arg0, %c0_i32 : i32, i32
  }
}

module attributes {stable_mosaic.version = 11 : i64} {
  func.func @_dlrm_fused_kernel(%arg0: i32, %arg1: memref<8x8xf32, #tpu.memory_space<vmem>>, %arg2: memref<8x48xbf16, #tpu.memory_space<vmem>>, %arg3: memref<96x6xf32, #tpu.memory_space<vmem>>, %arg4: memref<8x32xbf16, #tpu.memory_space<vmem>>, %arg5: memref<1x32xf32, #tpu.memory_space<vmem>>, %arg6: memref<32x16xbf16, #tpu.memory_space<vmem>>, %arg7: memref<1x16xf32, #tpu.memory_space<vmem>>, %arg8: memref<24x32xbf16, #tpu.memory_space<vmem>>, %arg9: memref<1x32xf32, #tpu.memory_space<vmem>>, %arg10: memref<1x32xf32, #tpu.memory_space<vmem>>, %arg11: memref<1x1xf32, #tpu.memory_space<vmem>>, %arg12: memref<8x1xf32, #tpu.memory_space<vmem>>) attributes {dimension_semantics = [#tpu.dimension_semantics<parallel>], iteration_bounds = array<i64: 1>, scalar_prefetch = 0 : i64, scratch_operands = 0 : i64, tpu.core_type = #tpu.core_type<tc>, window_params = [{transform_indices = @transform_0, window_bounds = array<i64: 8, 8>}, {transform_indices = @transform_1, window_bounds = array<i64: 8, 48>}, {pipeline_mode = #tpu.pipeline_mode<synchronous>, transform_indices = @transform_2, window_bounds = array<i64: 96, 6>}, {pipeline_mode = #tpu.pipeline_mode<synchronous>, transform_indices = @transform_3, window_bounds = array<i64: 8, 32>}, {pipeline_mode = #tpu.pipeline_mode<synchronous>, transform_indices = @transform_4, window_bounds = array<i64: 1, 32>}, {pipeline_mode = #tpu.pipeline_mode<synchronous>, transform_indices = @transform_5, window_bounds = array<i64: 32, 16>}, {pipeline_mode = #tpu.pipeline_mode<synchronous>, transform_indices = @transform_6, window_bounds = array<i64: 1, 16>}, {pipeline_mode = #tpu.pipeline_mode<synchronous>, transform_indices = @transform_7, window_bounds = array<i64: 24, 32>}, {pipeline_mode = #tpu.pipeline_mode<synchronous>, transform_indices = @transform_8, window_bounds = array<i64: 1, 32>}, {pipeline_mode = #tpu.pipeline_mode<synchronous>, transform_indices = @transform_9, window_bounds = array<i64: 1, 32>}, {pipeline_mode = #tpu.pipeline_mode<synchronous>, transform_indices = @transform_10, window_bounds = array<i64: 1, 1>}, {transform_indices = @transform_11, window_bounds = array<i64: 8, 1>}]} {
    %c0 = arith.constant 0 : index
    %c0_0 = arith.constant 0 : index
    %0 = vector.load %arg1[%c0, %c0_0] : memref<8x8xf32, #tpu.memory_space<vmem>>, vector<8x8xf32>
    %c0_1 = arith.constant 0 : index
    %c0_2 = arith.constant 0 : index
    %1 = vector.load %arg4[%c0_1, %c0_2] : memref<8x32xbf16, #tpu.memory_space<vmem>>, vector<8x32xbf16>
    %c0_3 = arith.constant 0 : index
    %c0_4 = arith.constant 0 : index
    %2 = vector.load %arg5[%c0_3, %c0_4] : memref<1x32xf32, #tpu.memory_space<vmem>>, vector<1x32xf32>
    %3 = arith.truncf %0 : vector<8x8xf32> to vector<8x8xbf16>
    %cst = arith.constant dense<0.000000e+00> : vector<8x32xf32>
    %4 = tpu.matmul %3, %1, %cst {dimension_numbers = #tpu.dot_dimension_numbers<[1], [0], [0], [1], [0, 0, 1, 1], [], []>} : vector<8x8xbf16>, vector<8x32xbf16>, vector<8x32xf32> -> vector<8x32xf32>
    %5 = vector.broadcast %2 : vector<1x32xf32> to vector<8x32xf32>
    %6 = arith.addf %4, %5 : vector<8x32xf32>
    %cst_5 = arith.constant 0.000000e+00 : f32
    %7 = vector.broadcast %cst_5 : f32 to vector<8x32xf32>
    %8 = arith.maximumf %6, %7 : vector<8x32xf32>
    %c0_6 = arith.constant 0 : index
    %c0_7 = arith.constant 0 : index
    %9 = vector.load %arg6[%c0_6, %c0_7] : memref<32x16xbf16, #tpu.memory_space<vmem>>, vector<32x16xbf16>
    %c0_8 = arith.constant 0 : index
    %c0_9 = arith.constant 0 : index
    %10 = vector.load %arg7[%c0_8, %c0_9] : memref<1x16xf32, #tpu.memory_space<vmem>>, vector<1x16xf32>
    %11 = arith.truncf %8 : vector<8x32xf32> to vector<8x32xbf16>
    %cst_10 = arith.constant dense<0.000000e+00> : vector<8x16xf32>
    %12 = tpu.matmul %11, %9, %cst_10 {dimension_numbers = #tpu.dot_dimension_numbers<[1], [0], [0], [1], [0, 0, 1, 1], [], []>} : vector<8x32xbf16>, vector<32x16xbf16>, vector<8x16xf32> -> vector<8x16xf32>
    %13 = vector.broadcast %10 : vector<1x16xf32> to vector<8x16xf32>
    %14 = arith.addf %12, %13 : vector<8x16xf32>
    %cst_11 = arith.constant 0.000000e+00 : f32
    %15 = vector.broadcast %cst_11 : f32 to vector<8x16xf32>
    %16 = arith.maximumf %14, %15 : vector<8x16xf32>
    %c0_12 = arith.constant 0 : index
    %c0_13 = arith.constant 0 : index
    %17 = vector.load %arg2[%c0_12, %c0_13] : memref<8x48xbf16, #tpu.memory_space<vmem>>, vector<8x48xbf16>
    %18 = arith.extf %17 : vector<8x48xbf16> to vector<8x48xf32>
    %19 = vector.extract_strided_slice %18 {offsets = [0, 0], sizes = [8, 16], strides = [1, 1]} : vector<8x48xf32> to vector<8x16xf32>
    %20 = vector.extract_strided_slice %18 {offsets = [0, 16], sizes = [8, 16], strides = [1, 1]} : vector<8x48xf32> to vector<8x16xf32>
    %21 = vector.extract_strided_slice %18 {offsets = [0, 32], sizes = [8, 16], strides = [1, 1]} : vector<8x48xf32> to vector<8x16xf32>
    %22 = tpu.concatenate %19, %20, %20, %21, %21, %21 in 1 : vector<8x16xf32>, vector<8x16xf32>, vector<8x16xf32>, vector<8x16xf32>, vector<8x16xf32>, vector<8x16xf32> -> vector<8x96xf32>
    %23 = tpu.concatenate %16, %16, %19, %16, %19, %20 in 1 : vector<8x16xf32>, vector<8x16xf32>, vector<8x16xf32>, vector<8x16xf32>, vector<8x16xf32>, vector<8x16xf32> -> vector<8x96xf32>
    %24 = arith.mulf %22, %23 : vector<8x96xf32>
    %c0_14 = arith.constant 0 : index
    %c0_15 = arith.constant 0 : index
    %25 = vector.load %arg3[%c0_14, %c0_15] : memref<96x6xf32, #tpu.memory_space<vmem>>, vector<96x6xf32>
    %cst_16 = arith.constant dense<0.000000e+00> : vector<8x6xf32>
    %26 = tpu.matmul %24, %25, %cst_16 {dimension_numbers = #tpu.dot_dimension_numbers<[1], [0], [0], [1], [0, 0, 1, 1], [], []>} : vector<8x96xf32>, vector<96x6xf32>, vector<8x6xf32> -> vector<8x6xf32>
    %27 = tpu.concatenate %16, %26 in 1 : vector<8x16xf32>, vector<8x6xf32> -> vector<8x22xf32>
    %cst_17 = arith.constant 0.000000e+00 : f32
    %28 = vector.broadcast %cst_17 : f32 to vector<8x2xf32>
    %29 = tpu.concatenate %27, %28 in 1 : vector<8x22xf32>, vector<8x2xf32> -> vector<8x24xf32>
    %c0_18 = arith.constant 0 : index
    %c0_19 = arith.constant 0 : index
    %30 = vector.load %arg8[%c0_18, %c0_19] : memref<24x32xbf16, #tpu.memory_space<vmem>>, vector<24x32xbf16>
    %c0_20 = arith.constant 0 : index
    %c0_21 = arith.constant 0 : index
    %31 = vector.load %arg9[%c0_20, %c0_21] : memref<1x32xf32, #tpu.memory_space<vmem>>, vector<1x32xf32>
    %32 = arith.truncf %29 : vector<8x24xf32> to vector<8x24xbf16>
    %cst_22 = arith.constant dense<0.000000e+00> : vector<8x32xf32>
    %33 = tpu.matmul %32, %30, %cst_22 {dimension_numbers = #tpu.dot_dimension_numbers<[1], [0], [0], [1], [0, 0, 1, 1], [], []>} : vector<8x24xbf16>, vector<24x32xbf16>, vector<8x32xf32> -> vector<8x32xf32>
    %34 = vector.broadcast %31 : vector<1x32xf32> to vector<8x32xf32>
    %35 = arith.addf %33, %34 : vector<8x32xf32>
    %cst_23 = arith.constant 0.000000e+00 : f32
    %36 = vector.broadcast %cst_23 : f32 to vector<8x32xf32>
    %37 = arith.maximumf %35, %36 : vector<8x32xf32>
    %c0_24 = arith.constant 0 : index
    %c0_25 = arith.constant 0 : index
    %38 = vector.load %arg10[%c0_24, %c0_25] : memref<1x32xf32, #tpu.memory_space<vmem>>, vector<1x32xf32>
    %c0_26 = arith.constant 0 : index
    %c0_27 = arith.constant 0 : index
    %39 = vector.load %arg11[%c0_26, %c0_27] : memref<1x1xf32, #tpu.memory_space<vmem>>, vector<1x1xf32>
    %40 = vector.broadcast %38 : vector<1x32xf32> to vector<8x32xf32>
    %41 = arith.mulf %37, %40 : vector<8x32xf32>
    %cst_28 = arith.constant dense<0.000000e+00> : vector<8xf32>
    %42 = vector.multi_reduction <add>, %41, %cst_28 [1] : vector<8x32xf32> to vector<8xf32>
    %43 = vector.shape_cast %42 : vector<8xf32> to vector<8x1xf32>
    %44 = vector.broadcast %39 : vector<1x1xf32> to vector<8x1xf32>
    %45 = arith.addf %43, %44 : vector<8x1xf32>
    %46 = arith.negf %45 : vector<8x1xf32>
    %47 = math.exp %46 : vector<8x1xf32>
    %cst_29 = arith.constant 1.000000e+00 : f32
    %48 = vector.broadcast %cst_29 : f32 to vector<8x1xf32>
    %49 = arith.addf %48, %47 : vector<8x1xf32>
    %50 = arith.divf %48, %49 : vector<8x1xf32>
    %c0_30 = arith.constant 0 : index
    %c0_31 = arith.constant 0 : index
    %51 = vector.load %arg12[%c0_30, %c0_31] : memref<8x1xf32, #tpu.memory_space<vmem>>, vector<8x1xf32>
    tpu.vector_store %arg12[%c0_30, %c0_31], %50 {strides = array<i32>} : memref<8x1xf32, #tpu.memory_space<vmem>>, vector<8x1xf32>,
    return
  }
  func.func @transform_0(%arg0: i32) -> (i32, i32) {
    %c0_i32 = arith.constant 0 : i32
    %c0_i32_0 = arith.constant 0 : i32
    return %arg0, %c0_i32 : i32, i32
  }
  func.func @transform_1(%arg0: i32) -> (i32, i32) {
    %c0_i32 = arith.constant 0 : i32
    %c0_i32_0 = arith.constant 0 : i32
    return %arg0, %c0_i32 : i32, i32
  }
  func.func @transform_2(%arg0: i32) -> (i32, i32) {
    %c0_i32 = arith.constant 0 : i32
    %c0_i32_0 = arith.constant 0 : i32
    %c0_i32_1 = arith.constant 0 : i32
    return %c0_i32, %c0_i32_0 : i32, i32
  }
  func.func @transform_3(%arg0: i32) -> (i32, i32) {
    %c0_i32 = arith.constant 0 : i32
    %c0_i32_0 = arith.constant 0 : i32
    %c0_i32_1 = arith.constant 0 : i32
    return %c0_i32, %c0_i32_0 : i32, i32
  }
  func.func @transform_4(%arg0: i32) -> (i32, i32) {
    %c0_i32 = arith.constant 0 : i32
    %c0_i32_0 = arith.constant 0 : i32
    %c0_i32_1 = arith.constant 0 : i32
    return %c0_i32, %c0_i32_0 : i32, i32
  }
  func.func @transform_5(%arg0: i32) -> (i32, i32) {
    %c0_i32 = arith.constant 0 : i32
    %c0_i32_0 = arith.constant 0 : i32
    %c0_i32_1 = arith.constant 0 : i32
    return %c0_i32, %c0_i32_0 : i32, i32
  }
  func.func @transform_6(%arg0: i32) -> (i32, i32) {
    %c0_i32 = arith.constant 0 : i32
    %c0_i32_0 = arith.constant 0 : i32
    %c0_i32_1 = arith.constant 0 : i32
    return %c0_i32, %c0_i32_0 : i32, i32
  }
  func.func @transform_7(%arg0: i32) -> (i32, i32) {
    %c0_i32 = arith.constant 0 : i32
    %c0_i32_0 = arith.constant 0 : i32
    %c0_i32_1 = arith.constant 0 : i32
    return %c0_i32, %c0_i32_0 : i32, i32
  }
  func.func @transform_8(%arg0: i32) -> (i32, i32) {
    %c0_i32 = arith.constant 0 : i32
    %c0_i32_0 = arith.constant 0 : i32
    %c0_i32_1 = arith.constant 0 : i32
    return %c0_i32, %c0_i32_0 : i32, i32
  }
  func.func @transform_9(%arg0: i32) -> (i32, i32) {
    %c0_i32 = arith.constant 0 : i32
    %c0_i32_0 = arith.constant 0 : i32
    %c0_i32_1 = arith.constant 0 : i32
    return %c0_i32, %c0_i32_0 : i32, i32
  }
  func.func @transform_10(%arg0: i32) -> (i32, i32) {
    %c0_i32 = arith.constant 0 : i32
    %c0_i32_0 = arith.constant 0 : i32
    %c0_i32_1 = arith.constant 0 : i32
    return %c0_i32, %c0_i32_0 : i32, i32
  }
  func.func @transform_11(%arg0: i32) -> (i32, i32) {
    %c0_i32 = arith.constant 0 : i32
    %c0_i32_0 = arith.constant 0 : i32
    return %arg0, %c0_i32 : i32, i32
  }
}

</mosaic_0001>

<llo_original>
// kernel: dlrm_forward.2
$region0: #{dlrm_forward.2}
  #allocation0 [shape = 'u32[]', space=smem, size = 0x4, offset = 0x4, fixed_abs, tag = 'smem constant byte address 0x4 - core index']
  #allocation1 [shape = 'u32[144,128]{1,0:T(1,128)}', space=vmem, size = 0x12000, scoped, tag = 'internal scratch']
  %s0 = inlined_call_operand.vmem [shape: s32[8,6], index: 0, kind: input, shape index: {}]
  %s1 = inlined_call_operand.vmem [shape: bf16[104,16], index: 1, kind: input, shape index: {}]
  %s2 = inlined_call_operand.vmem [shape: bf16[8,48], index: 2, kind: output, shape index: {}]
  %s3 = sld [smem:[#allocation0]]
  $region18: #{dlrm_forward.2} parent=0
    _
  %s5 = ssub.s32 1, %s3
  %s6 = scalar_select 0, %s5, %s3
  // Predicated region
  $region2: #{dlrm_forward.2} parent=0 // pred_check
    _
  $region3: #{dlrm_forward.2} parent=0 // pred_check_branch
    %8 = sbr.rel (0) target = $region5
  $region4: #{dlrm_forward.2} parent=0 // pred_region
    _
  $region5: #{dlrm_forward.2} parent=0 // pred_fallthru
    _
  // Predicated region
  $region6: #{dlrm_forward.2} parent=0 // pred_check
    _
  $region7: #{dlrm_forward.2} parent=0 // pred_check_branch
    %10 = sbr.rel (0) target = $region9
  $region8: #{dlrm_forward.2} parent=0 // pred_region
    _
  $region9: #{dlrm_forward.2} parent=0 // pred_fallthru
    _
  %v12 = vld [vmem:[%s0] sm:$0xff]
  %v13 = vlaneseq
  %v14 = vand.u32 %v13, 127
  %15 = vset.pattern.permute.xlu0 0
  %16 = vperm.xlu0 %15, %v12
  %v17 = vpop.permute.xlu0 %16
  %vm18 = vcmp.eq.s32.totalorder %v14, %v17
  %v19 = vsel %vm18, 1, 0
  %v20 = vcvt.s32.f32 %v19
  %v21 = vadd.f32 %v20, 0.0
  %22 = vset.pattern.permute.xlu0 1
  %23 = vperm.xlu0 %22, %v12
  %v24 = vpop.permute.xlu0 %23
  %vm25 = vcmp.eq.s32.totalorder %v14, %v24
  %v26 = vsel %vm25, 1, 0
  %v27 = vcvt.s32.f32 %v26
  %v28 = vadd.f32 %v21, %v27
  %v29 = vpack.c.bf16 %v28, %v28
  %v30 = vld [vmem:[%s1] sm:$0xf]
  %v31 = vld [vmem:[%s1 + $0x4] sm:$0xf]
  %v32 = vld [vmem:[%s1 + $0x8] sm:$0xf]
  %v36 = vunpack.c.l.b16 %v30
  %v37 = vunpack.c.l.b16 %v31
  %v38 = vunpack.c.l.b16 %v32
  %v39 = vpack.c.b16 %v37, %v36
  %v40 = vpack.c.b16 %v38, %v38
  %vm42 = vcmask 195584
  %v44 = vsel %vm42, %v29, 0
  %vm46 = vcmask 1043456
  %v48 = vsel %vm46, %v40, 0
  %50 = vmatprep.subr.bf16.mxu0 0
  %51 = vmatpush1.bf16.msra.mxu0 %v39
  %52 = vmatprep.subr.bf16.mxu0 0
  %53 = vmatpush1.bf16.msra.mxu0 %v48
  %54 = vmatprep.subr.bf16.mxu0 0
  %55 = vmatpush1.bf16.msra.mxu0 0
  %56 = vmatprep.subr.bf16.mxu0 0
  %57 = vmatpush1.bf16.msra.mxu0 0
  %58 = vmatprep.subr.bf16.mxu0 0
  %59 = vmatpush1.bf16.msra.mxu0 0
  %60 = vmatprep.subr.bf16.mxu0 0
  %61 = vmatpush1.bf16.msra.mxu0 0
  %62 = vmatprep.subr.bf16.mxu0 0
  %63 = vmatpush1.bf16.msra.mxu0 0
  %64 = vmatprep.subr.bf16.mxu0 0
  %65 = vmatpush1.bf16.msra.mxu0 0
  %66 = vmatprep.subr.bf16.mxu0 0
  %67 = vmatpush1.bf16.msra.mxu0 0
  %68 = vmatprep.subr.bf16.mxu0 0
  %69 = vmatpush1.bf16.msra.mxu0 0
  %70 = vmatprep.subr.bf16.mxu0 0
  %71 = vmatpush1.bf16.msra.mxu0 0
  %72 = vmatprep.subr.bf16.mxu0 0
  %73 = vmatpush1.bf16.msra.mxu0 0
  %74 = vmatprep.subr.bf16.mxu0 0
  %75 = vmatpush1.bf16.msra.mxu0 0
  %76 = vmatprep.subr.bf16.mxu0 0
  %77 = vmatpush1.bf16.msra.mxu0 0
  %78 = vmatprep.subr.bf16.mxu0 0
  %79 = vmatpush1.bf16.msra.mxu0 0
  %80 = vmatprep.subr.bf16.mxu0 0
  %81 = vmatpush1.bf16.msra.mxu0 0
  %82 = vmatprep.mubr.bf16.mxu0 0
  %83 = vmatmul.mubr.bf16.gmra.mrb[0].mxu0 %v44
  %v84 = vpop.f32.mrb[0].mxu0
  %v85 = vadd.f32 0.0, %v84
  %v86 = vpop.f32.mrb[0].mxu0
  %v87 = vpop.f32.mrb[0].mxu0
  %v88 = vpop.f32.mrb[0].mxu0
  %89 = vdwg.mxu0
  %90 = vset.pattern.permute.xlu0 2
  %91 = vperm.xlu0 %90, %v12
  %v92 = vpop.permute.xlu0 %91
  %vm93 = vcmp.eq.s32.totalorder %v14, %v92
  %v94 = vsel %vm93, 1, 0
  %v95 = vcvt.s32.f32 %v94
  %v96 = vadd.f32 %v95, 0.0
  %97 = vset.pattern.permute.xlu0 3
  %98 = vperm.xlu0 %97, %v12
  %v99 = vpop.permute.xlu0 %98
  %vm100 = vcmp.eq.s32.totalorder %v14, %v99
  %v101 = vsel %vm100, 1, 0
  %v102 = vcvt.s32.f32 %v101
  %v103 = vadd.f32 %v96, %v102
  %v104 = vpack.c.bf16 %v103, %v103
  %v105 = vld [vmem:[%s1 + $0xc] sm:$0xf]
  %v106 = vld [vmem:[%s1 + $0x10] sm:$0xf]
  %v107 = vld [vmem:[%s1 + $0x14] sm:$0xf]
  %v108 = vld [vmem:[%s1 + $0x18] sm:$0xf]
  %v113 = vunpack.c.l.b16 %v105
  %v114 = vunpack.c.l.b16 %v106
  %v115 = vunpack.c.l.b16 %v107
  %v116 = vunpack.c.l.b16 %v108
  %v117 = vpack.c.b16 %v114, %v113
  %v118 = vpack.c.b16 %v116, %v115
  %vm121 = vcmask 261120
  %v123 = vsel %vm121, %v104, 0
  %125 = vmatprep.subr.bf16.mxu0 0
  %126 = vmatpush1.bf16.msra.mxu0 %v117
  %127 = vmatprep.subr.bf16.mxu0 0
  %128 = vmatpush1.bf16.msra.mxu0 %v118
  %129 = vmatprep.subr.bf16.mxu0 0
  %130 = vmatpush1.bf16.msra.mxu0 0
  %131 = vmatprep.subr.bf16.mxu0 0
  %132 = vmatpush1.bf16.msra.mxu0 0
  %133 = vmatprep.subr.bf16.mxu0 0
  %134 = vmatpush1.bf16.msra.mxu0 0
  %135 = vmatprep.subr.bf16.mxu0 0
  %136 = vmatpush1.bf16.msra.mxu0 0
  %137 = vmatprep.subr.bf16.mxu0 0
  %138 = vmatpush1.bf16.msra.mxu0 0
  %139 = vmatprep.subr.bf16.mxu0 0
  %140 = vmatpush1.bf16.msra.mxu0 0
  %141 = vmatprep.subr.bf16.mxu0 0
  %142 = vmatpush1.bf16.msra.mxu0 0
  %143 = vmatprep.subr.bf16.mxu0 0
  %144 = vmatpush1.bf16.msra.mxu0 0
  %145 = vmatprep.subr.bf16.mxu0 0
  %146 = vmatpush1.bf16.msra.mxu0 0
  %147 = vmatprep.subr.bf16.mxu0 0
  %148 = vmatpush1.bf16.msra.mxu0 0
  %149 = vmatprep.subr.bf16.mxu0 0
  %150 = vmatpush1.bf16.msra.mxu0 0
  %151 = vmatprep.subr.bf16.mxu0 0
  %152 = vmatpush1.bf16.msra.mxu0 0
  %153 = vmatprep.subr.bf16.mxu0 0
  %154 = vmatpush1.bf16.msra.mxu0 0
  %155 = vmatprep.subr.bf16.mxu0 0
  %156 = vmatpush1.bf16.msra.mxu0 0
  %157 = vmatprep.mubr.bf16.mxu0 0
  %158 = vmatmul.mubr.bf16.gmra.mrb[0].mxu0 %v123
  %v159 = vpop.f32.mrb[0].mxu0
  %v160 = vadd.f32 0.0, %v159
  %v161 = vpop.f32.mrb[0].mxu0
  %v162 = vpop.f32.mrb[0].mxu0
  %v163 = vpop.f32.mrb[0].mxu0
  %164 = vdwg.mxu0
  %165 = vset.pattern.permute.xlu0 4
  %166 = vperm.xlu0 %165, %v12
  %v167 = vpop.permute.xlu0 %166
  %vm168 = vcmp.eq.s32.totalorder %v14, %v167
  %v169 = vsel %vm168, 1, 0
  %v170 = vcvt.s32.f32 %v169
  %v171 = vadd.f32 %v170, 0.0
  %172 = vset.pattern.permute.xlu0 5
  %173 = vperm.xlu0 %172, %v12
  %v174 = vpop.permute.xlu0 %173
  %vm175 = vcmp.eq.s32.totalorder %v14, %v174
  %v176 = vsel %vm175, 1, 0
  %v177 = vcvt.s32.f32 %v176
  %v178 = vadd.f32 %v171, %v177
  %v179 = vpack.c.bf16 %v178, %v178
  %v180 = vld [vmem:[%s1 + $0x1c] sm:$0xf]
  %v181 = vld [vmem:[%s1 + $0x20] sm:$0xf]
  %v182 = vld [vmem:[%s1 + $0x24] sm:$0xf]
  %v183 = vld [vmem:[%s1 + $0x28] sm:$0xf]
  %v184 = vld [vmem:[%s1 + $0x2c] sm:$0xf]
  %v190 = vunpack.c.l.b16 %v180
  %v191 = vunpack.c.l.b16 %v181
  %v192 = vunpack.c.l.b16 %v182
  %v193 = vunpack.c.l.b16 %v183
  %v194 = vunpack.c.l.b16 %v184
  %v195 = vpack.c.b16 %v191, %v190
  %v196 = vpack.c.b16 %v193, %v192
  %v197 = vpack.c.b16 %v194, %v194
  %vm200 = vcmask 326656
  %v202 = vsel %vm200, %v179, 0
  %v205 = vsel %vm46, %v197, 0
  %207 = vmatprep.subr.bf16.mxu0 0
  %208 = vmatpush1.bf16.msra.mxu0 %v195
  %209 = vmatprep.subr.bf16.mxu0 0
  %210 = vmatpush1.bf16.msra.mxu0 %v196
  %211 = vmatprep.subr.bf16.mxu0 0
  %212 = vmatpush1.bf16.msra.mxu0 %v205
  %213 = vmatprep.subr.bf16.mxu0 0
  %214 = vmatpush1.bf16.msra.mxu0 0
  %215 = vmatprep.subr.bf16.mxu0 0
  %216 = vmatpush1.bf16.msra.mxu0 0
  %217 = vmatprep.subr.bf16.mxu0 0
  %218 = vmatpush1.bf16.msra.mxu0 0
  %219 = vmatprep.subr.bf16.mxu0 0
  %220 = vmatpush1.bf16.msra.mxu0 0
  %221 = vmatprep.subr.bf16.mxu0 0
  %222 = vmatpush1.bf16.msra.mxu0 0
  %223 = vmatprep.subr.bf16.mxu0 0
  %224 = vmatpush1.bf16.msra.mxu0 0
  %225 = vmatprep.subr.bf16.mxu0 0
  %226 = vmatpush1.bf16.msra.mxu0 0
  %227 = vmatprep.subr.bf16.mxu0 0
  %228 = vmatpush1.bf16.msra.mxu0 0
  %229 = vmatprep.subr.bf16.mxu0 0
  %230 = vmatpush1.bf16.msra.mxu0 0
  %231 = vmatprep.subr.bf16.mxu0 0
  %232 = vmatpush1.bf16.msra.mxu0 0
  %233 = vmatprep.subr.bf16.mxu0 0
  %234 = vmatpush1.bf16.msra.mxu0 0
  %235 = vmatprep.subr.bf16.mxu0 0
  %236 = vmatpush1.bf16.msra.mxu0 0
  %237 = vmatprep.subr.bf16.mxu0 0
  %238 = vmatpush1.bf16.msra.mxu0 0
  %239 = vmatprep.mubr.bf16.mxu0 0
  %240 = vmatmul.mubr.bf16.gmra.mrb[0].mxu0 %v202
  %v241 = vpop.f32.mrb[0].mxu0
  %v242 = vadd.f32 0.0, %v241
  %v243 = vpop.f32.mrb[0].mxu0
  %v244 = vpop.f32.mrb[0].mxu0
  %v245 = vpop.f32.mrb[0].mxu0
  %246 = vdwg.mxu0
  %248 = vrot.lane.b32.xlu0 %v160, 16
  %v249 = vpop.permute.xlu0 %248
  %252 = vrot.lane.b32.xlu0 %v242, 32
  %v253 = vpop.permute.xlu0 %252
  %vm255 = vcmask 130048
  %v256 = vsel %vm255, %v85, %v249
  %v257 = vsel %vm121, %v256, %v253
  %v258 = vpack.c.bf16 %v257, %v257
  %vm259 = vcmask 388096
  %260 = vst.msk [vmem:[%s2] sm:$0xf] %vm259, %v258
  // Predicated region
  $region10: #{dlrm_forward.2} parent=0 // pred_check
    _
  $region11: #{dlrm_forward.2} parent=0 // pred_check_branch
    %262 = sbr.rel (0) target = $region13
  $region12: #{dlrm_forward.2} parent=0 // pred_region
    _
  $region13: #{dlrm_forward.2} parent=0 // pred_fallthru
    _
  // Predicated region
  $region14: #{dlrm_forward.2} parent=0 // pred_check
    _
  $region15: #{dlrm_forward.2} parent=0 // pred_check_branch
    %264 = sbr.rel (0) target = $region17
  $region16: #{dlrm_forward.2} parent=0 // pred_region
    _
  $region17: #{dlrm_forward.2} parent=0 // pred_fallthru
    _

// kernel: dlrm_forward.3
$region0: #{dlrm_forward.3}
  #allocation0 [shape = 'u32[]', space=smem, size = 0x4, offset = 0x4, fixed_abs, tag = 'smem constant byte address 0x4 - core index']
  #allocation1 [shape = 'u32[144,128]{1,0:T(1,128)}', space=vmem, size = 0x12000, scoped, tag = 'internal scratch']
  #allocation2 [shape = 'f32[1,1]{1,0:T(1,128)S(1)}', space=vmem, size = 0x200, scoped, tag = 'scoped memory for dlrm_forward.3']
  %s0 = inlined_call_operand.vmem [shape: f32[8,8], index: 0, kind: input, shape index: {}]
  %s1 = inlined_call_operand.vmem [shape: bf16[8,48], index: 1, kind: input, shape index: {}]
  %s2 = inlined_call_operand.vmem [shape: f32[96,6], index: 2, kind: input, shape index: {}]
  %s3 = inlined_call_operand.vmem [shape: bf16[8,32], index: 3, kind: input, shape index: {}]
  %s4 = inlined_call_operand.vmem [shape: f32[1,32], index: 4, kind: input, shape index: {}]
  %s5 = inlined_call_operand.vmem [shape: bf16[32,16], index: 5, kind: input, shape index: {}]
  %s6 = inlined_call_operand.vmem [shape: f32[1,16], index: 6, kind: input, shape index: {}]
  %s7 = inlined_call_operand.vmem [shape: bf16[24,32], index: 7, kind: input, shape index: {}]
  %s8 = inlined_call_operand.vmem [shape: f32[1,32], index: 8, kind: input, shape index: {}]
  %s9 = inlined_call_operand.vmem [shape: f32[1,32], index: 9, kind: input, shape index: {}]
  %s10 = inlined_call_operand.<no memory space> [shape: f32[1,1], index: 10, kind: input, shape index: {}]
  %s11 = inlined_call_operand.vmem [shape: f32[8,1], index: 11, kind: output, shape index: {}]
  %s12 = sld [smem:[#allocation0]]
  $region54: #{dlrm_forward.3} parent=0
    _
  %s14 = ssub.s32 1, %s12
  %s15 = scalar_select 0, %s14, %s12
  %v16 = vstv %s10
  %17 = vst [vmem:[#allocation2] sm:$0x1] %v16
  // Predicated region
  $region2: #{dlrm_forward.3} parent=0 // pred_check
    _
  $region3: #{dlrm_forward.3} parent=0 // pred_check_branch
    %19 = sbr.rel (0) target = $region5
  $region4: #{dlrm_forward.3} parent=0 // pred_region
    _
  $region5: #{dlrm_forward.3} parent=0 // pred_fallthru
    _
  // Predicated region
  $region6: #{dlrm_forward.3} parent=0 // pred_check
    _
  $region7: #{dlrm_forward.3} parent=0 // pred_check_branch
    %21 = sbr.rel (0) target = $region9
  $region8: #{dlrm_forward.3} parent=0 // pred_region
    _
  $region9: #{dlrm_forward.3} parent=0 // pred_fallthru
    _
  // Predicated region
  $region10: #{dlrm_forward.3} parent=0 // pred_check
    _
  $region11: #{dlrm_forward.3} parent=0 // pred_check_branch
    %23 = sbr.rel (0) target = $region13
  $region12: #{dlrm_forward.3} parent=0 // pred_region
    _
  $region13: #{dlrm_forward.3} parent=0 // pred_fallthru
    _
  // Predicated region
  $region14: #{dlrm_forward.3} parent=0 // pred_check
    _
  $region15: #{dlrm_forward.3} parent=0 // pred_check_branch
    %25 = sbr.rel (0) target = $region17
  $region16: #{dlrm_forward.3} parent=0 // pred_region
    _
  $region17: #{dlrm_forward.3} parent=0 // pred_fallthru
    _
  // Predicated region
  $region18: #{dlrm_forward.3} parent=0 // pred_check
    _
  $region19: #{dlrm_forward.3} parent=0 // pred_check_branch
    %27 = sbr.rel (0) target = $region21
  $region20: #{dlrm_forward.3} parent=0 // pred_region
    _
  $region21: #{dlrm_forward.3} parent=0 // pred_fallthru
    _
  // Predicated region
  $region22: #{dlrm_forward.3} parent=0 // pred_check
    _
  $region23: #{dlrm_forward.3} parent=0 // pred_check_branch
    %29 = sbr.rel (0) target = $region25
  $region24: #{dlrm_forward.3} parent=0 // pred_region
    _
  $region25: #{dlrm_forward.3} parent=0 // pred_fallthru
    _
  // Predicated region
  $region26: #{dlrm_forward.3} parent=0 // pred_check
    _
  $region27: #{dlrm_forward.3} parent=0 // pred_check_branch
    %31 = sbr.rel (0) target = $region29
  $region28: #{dlrm_forward.3} parent=0 // pred_region
    _
  $region29: #{dlrm_forward.3} parent=0 // pred_fallthru
    _
  // Predicated region
  $region30: #{dlrm_forward.3} parent=0 // pred_check
    _
  $region31: #{dlrm_forward.3} parent=0 // pred_check_branch
    %33 = sbr.rel (0) target = $region33
  $region32: #{dlrm_forward.3} parent=0 // pred_region
    _
  $region33: #{dlrm_forward.3} parent=0 // pred_fallthru
    _
  // Predicated region
  $region34: #{dlrm_forward.3} parent=0 // pred_check
    _
  $region35: #{dlrm_forward.3} parent=0 // pred_check_branch
    %35 = sbr.rel (0) target = $region37
  $region36: #{dlrm_forward.3} parent=0 // pred_region
    _
  $region37: #{dlrm_forward.3} parent=0 // pred_fallthru
    _
  // Predicated region
  $region38: #{dlrm_forward.3} parent=0 // pred_check
    _
  $region39: #{dlrm_forward.3} parent=0 // pred_check_branch
    %37 = sbr.rel (0) target = $region41
  $region40: #{dlrm_forward.3} parent=0 // pred_region
    _
  $region41: #{dlrm_forward.3} parent=0 // pred_fallthru
    _
  // Predicated region
  $region42: #{dlrm_forward.3} parent=0 // pred_check
    _
  $region43: #{dlrm_forward.3} parent=0 // pred_check_branch
    %39 = sbr.rel (0) target = $region45
  $region44: #{dlrm_forward.3} parent=0 // pred_region
    _
  $region45: #{dlrm_forward.3} parent=0 // pred_fallthru
    _
  %v41 = vld [vmem:[%s0] sm:$0xff]
  %v42 = vld [vmem:[%s3] sm:$0xf]
  %v43 = vld [vmem:[%s4] sm:$0x1]
  %v44 = vpack.c.bf16 %v41, %v41
  %v46 = vlaneseq
  %v47 = vshrl.u32 %v46, 7
  %v48 = vsub.s32 0, %v47
  %v49 = vrot.slane %v43, %v48
  %vm51 = vcmask 64512
  %v53 = vsel %vm51, %v44, 0
  %vm55 = vcmask 1043456
  %v57 = vsel %vm55, %v42, 0
  %59 = vmatprep.subr.bf16.mxu0 0
  %60 = vmatpush1.bf16.msra.mxu0 %v57
  %61 = vmatprep.subr.bf16.mxu0 0
  %62 = vmatpush1.bf16.msra.mxu0 0
  %63 = vmatprep.subr.bf16.mxu0 0
  %64 = vmatpush1.bf16.msra.mxu0 0
  %65 = vmatprep.subr.bf16.mxu0 0
  %66 = vmatpush1.bf16.msra.mxu0 0
  %67 = vmatprep.subr.bf16.mxu0 0
  %68 = vmatpush1.bf16.msra.mxu0 0
  %69 = vmatprep.subr.bf16.mxu0 0
  %70 = vmatpush1.bf16.msra.mxu0 0
  %71 = vmatprep.subr.bf16.mxu0 0
  %72 = vmatpush1.bf16.msra.mxu0 0
  %73 = vmatprep.subr.bf16.mxu0 0
  %74 = vmatpush1.bf16.msra.mxu0 0
  %75 = vmatprep.subr.bf16.mxu0 0
  %76 = vmatpush1.bf16.msra.mxu0 0
  %77 = vmatprep.subr.bf16.mxu0 0
  %78 = vmatpush1.bf16.msra.mxu0 0
  %79 = vmatprep.subr.bf16.mxu0 0
  %80 = vmatpush1.bf16.msra.mxu0 0
  %81 = vmatprep.subr.bf16.mxu0 0
  %82 = vmatpush1.bf16.msra.mxu0 0
  %83 = vmatprep.subr.bf16.mxu0 0
  %84 = vmatpush1.bf16.msra.mxu0 0
  %85 = vmatprep.subr.bf16.mxu0 0
  %86 = vmatpush1.bf16.msra.mxu0 0
  %87 = vmatprep.subr.bf16.mxu0 0
  %88 = vmatpush1.bf16.msra.mxu0 0
  %89 = vmatprep.subr.bf16.mxu0 0
  %90 = vmatpush1.bf16.msra.mxu0 0
  %91 = vmatprep.mubr.bf16.mxu0 0
  %92 = vmatmul.mubr.bf16.gmra.mrb[0].mxu0 %v53
  %v93 = vpop.f32.mrb[0].mxu0
  %v94 = vadd.f32 %v49, %v93
  %v95 = vpop.f32.mrb[0].mxu0
  %v96 = vpop.f32.mrb[0].mxu0
  %v97 = vpop.f32.mrb[0].mxu0
  %98 = vdwg.mxu0
  %v99 = vmax.f32 %v94, 0.0
  %v100 = vld [vmem:[%s5] sm:$0xf]
  %v101 = vld [vmem:[%s5 + $0x4] sm:$0xf]
  %v102 = vld [vmem:[%s5 + $0x8] sm:$0xf]
  %v103 = vld [vmem:[%s5 + $0xc] sm:$0xf]
  %v104 = vld [vmem:[%s6] sm:$0x1]
  %v105 = vpack.c.bf16 %v99, %v99
  %v107 = vlaneseq
  %v108 = vshrl.u32 %v107, 7
  %v109 = vsub.s32 0, %v108
  %v110 = vrot.slane %v104, %v109
  %v116 = vunpack.c.l.b16 %v100
  %v117 = vunpack.c.l.b16 %v101
  %v118 = vunpack.c.l.b16 %v102
  %v119 = vunpack.c.l.b16 %v103
  %v120 = vpack.c.b16 %v117, %v116
  %v121 = vpack.c.b16 %v119, %v118
  %vm124 = vcmask 261120
  %v126 = vsel %vm124, %v105, 0
  %128 = vmatprep.subr.bf16.mxu0 0
  %129 = vmatpush1.bf16.msra.mxu0 %v120
  %130 = vmatprep.subr.bf16.mxu0 0
  %131 = vmatpush1.bf16.msra.mxu0 %v121
  %132 = vmatprep.subr.bf16.mxu0 0
  %133 = vmatpush1.bf16.msra.mxu0 0
  %134 = vmatprep.subr.bf16.mxu0 0
  %135 = vmatpush1.bf16.msra.mxu0 0
  %136 = vmatprep.subr.bf16.mxu0 0
  %137 = vmatpush1.bf16.msra.mxu0 0
  %138 = vmatprep.subr.bf16.mxu0 0
  %139 = vmatpush1.bf16.msra.mxu0 0
  %140 = vmatprep.subr.bf16.mxu0 0
  %141 = vmatpush1.bf16.msra.mxu0 0
  %142 = vmatprep.subr.bf16.mxu0 0
  %143 = vmatpush1.bf16.msra.mxu0 0
  %144 = vmatprep.subr.bf16.mxu0 0
  %145 = vmatpush1.bf16.msra.mxu0 0
  %146 = vmatprep.subr.bf16.mxu0 0
  %147 = vmatpush1.bf16.msra.mxu0 0
  %148 = vmatprep.subr.bf16.mxu0 0
  %149 = vmatpush1.bf16.msra.mxu0 0
  %150 = vmatprep.subr.bf16.mxu0 0
  %151 = vmatpush1.bf16.msra.mxu0 0
  %152 = vmatprep.subr.bf16.mxu0 0
  %153 = vmatpush1.bf16.msra.mxu0 0
  %154 = vmatprep.subr.bf16.mxu0 0
  %155 = vmatpush1.bf16.msra.mxu0 0
  %156 = vmatprep.subr.bf16.mxu0 0
  %157 = vmatpush1.bf16.msra.mxu0 0
  %158 = vmatprep.subr.bf16.mxu0 0
  %159 = vmatpush1.bf16.msra.mxu0 0
  %160 = vmatprep.mubr.bf16.mxu0 0
  %161 = vmatmul.mubr.bf16.gmra.mrb[0].mxu0 %v126
  %v162 = vpop.f32.mrb[0].mxu0
  %v163 = vadd.f32 %v110, %v162
  %v164 = vpop.f32.mrb[0].mxu0
  %v165 = vpop.f32.mrb[0].mxu0
  %v166 = vpop.f32.mrb[0].mxu0
  %167 = vdwg.mxu0
  %v168 = vmax.f32 %v163, 0.0
  %v169 = vld [vmem:[%s1] sm:$0xf]
  %v170 = vunpack.c.l.bf16 %v169
  %172 = vrot.lane.b32.xlu0 %v170, 16
  %v173 = vpop.permute.xlu0 %172
  %175 = vrot.lane.b32.xlu0 %v170, 32
  %v176 = vpop.permute.xlu0 %175
  %178 = vrot.lane.b32.xlu0 %v170, 48
  %v179 = vpop.permute.xlu0 %178
  %v181 = vsel %vm124, %v170, %v173
  %vm182 = vcmask 392192
  %v183 = vsel %vm182, %v181, %v173
  %vm184 = vcmask 523264
  %v185 = vsel %vm184, %v183, %v176
  %vm186 = vcmask 654336
  %v187 = vsel %vm186, %v185, %v179
  %189 = vrot.lane.b32.xlu0 %v168, 16
  %v190 = vpop.permute.xlu0 %189
  %192 = vrot.lane.b32.xlu0 %v168, 48
  %v193 = vpop.permute.xlu0 %192
  %195 = vrot.lane.b32.xlu0 %v170, 64
  %v196 = vpop.permute.xlu0 %195
  %vm198 = vcmask 130048
  %v199 = vsel %vm198, %v168, %v190
  %v200 = vsel %vm124, %v199, %v176
  %v201 = vsel %vm182, %v200, %v193
  %v202 = vsel %vm184, %v201, %v196
  %v203 = vsel %vm186, %v202, %v196
  %v204 = vmul.f32 %v187, %v203
  %v205 = vld [vmem:[%s2] sm:$0xff]
  %v206 = vld [vmem:[%s2 + $0x8] sm:$0xff]
  %v207 = vld [vmem:[%s2 + $0x10] sm:$0xff]
  %v208 = vld [vmem:[%s2 + $0x18] sm:$0xff]
  %v209 = vld [vmem:[%s2 + $0x20] sm:$0xff]
  %v210 = vld [vmem:[%s2 + $0x28] sm:$0xff]
  %v211 = vld [vmem:[%s2 + $0x30] sm:$0xff]
  %v212 = vld [vmem:[%s2 + $0x38] sm:$0xff]
  %v213 = vld [vmem:[%s2 + $0x40] sm:$0xff]
  %v214 = vld [vmem:[%s2 + $0x48] sm:$0xff]
  %v215 = vld [vmem:[%s2 + $0x50] sm:$0xff]
  %v216 = vld [vmem:[%s2 + $0x58] sm:$0xff]
  %vm217 = vcmask 785408
  %v219 = vsel %vm217, %v204, 0
  %221 = vmatprep.subr.mxu0 0.0
  %222 = vmatpush1.msra.mxu0 %v205
  %223 = vmatprep.subr.mxu0 0.0
  %224 = vmatpush1.msra.mxu0 %v206
  %225 = vmatprep.subr.mxu0 0.0
  %226 = vmatpush1.msra.mxu0 %v207
  %227 = vmatprep.subr.mxu0 0.0
  %228 = vmatpush1.msra.mxu0 %v208
  %229 = vmatprep.subr.mxu0 0.0
  %230 = vmatpush1.msra.mxu0 %v209
  %231 = vmatprep.subr.mxu0 0.0
  %232 = vmatpush1.msra.mxu0 %v210
  %233 = vmatprep.subr.mxu0 0.0
  %234 = vmatpush1.msra.mxu0 %v211
  %235 = vmatprep.subr.mxu0 0.0
  %236 = vmatpush1.msra.mxu0 %v212
  %237 = vmatprep.subr.mxu0 0.0
  %238 = vmatpush1.msra.mxu0 %v213
  %239 = vmatprep.subr.mxu0 0.0
  %240 = vmatpush1.msra.mxu0 %v214
  %241 = vmatprep.subr.mxu0 0.0
  %242 = vmatpush1.msra.mxu0 %v215
  %243 = vmatprep.subr.mxu0 0.0
  %244 = vmatpush1.msra.mxu0 %v216
  %245 = vmatprep.subr.mxu0 0.0
  %246 = vmatpush1.msra.mxu0 0.0
  %247 = vmatprep.subr.mxu0 0.0
  %248 = vmatpush1.msra.mxu0 0.0
  %249 = vmatprep.subr.mxu0 0.0
  %250 = vmatpush1.msra.mxu0 0.0
  %251 = vmatprep.subr.mxu0 0.0
  %252 = vmatpush1.msra.mxu0 0.0
  %253 = vmatprep.subr.mxu0 0.0
  %254 = vmatpush1.msra.mxu0 0.0
  %255 = vmatprep.subr.mxu0 0.0
  %256 = vmatpush1.msra.mxu0 0.0
  %257 = vmatprep.subr.mxu0 0.0
  %258 = vmatpush1.msra.mxu0 0.0
  %259 = vmatprep.subr.mxu0 0.0
  %260 = vmatpush1.msra.mxu0 0.0
  %261 = vmatprep.subr.mxu0 0.0
  %262 = vmatpush1.msra.mxu0 0.0
  %263 = vmatprep.subr.mxu0 0.0
  %264 = vmatpush1.msra.mxu0 0.0
  %265 = vmatprep.subr.mxu0 0.0
  %266 = vmatpush1.msra.mxu0 0.0
  %267 = vmatprep.subr.mxu0 0.0
  %268 = vmatpush1.msra.mxu0 0.0
  %269 = vmatprep.subr.mxu0 0.0
  %270 = vmatpush1.msra.mxu0 0.0
  %271 = vmatprep.subr.mxu0 0.0
  %272 = vmatpush1.msra.mxu0 0.0
  %273 = vmatprep.subr.mxu0 0.0
  %274 = vmatpush1.msra.mxu0 0.0
  %275 = vmatprep.subr.mxu0 0.0
  %276 = vmatpush1.msra.mxu0 0.0
  %277 = vmatprep.subr.mxu0 0.0
  %278 = vmatpush1.msra.mxu0 0.0
  %279 = vmatprep.subr.mxu0 0.0
  %280 = vmatpush1.msra.mxu0 0.0
  %281 = vmatprep.subr.mxu0 0.0
  %282 = vmatpush1.msra.mxu0 0.0
  %283 = vmatprep.subr.mxu0 0.0
  %284 = vmatpush1.msra.mxu0 0.0
  %285 = vmatprep.mubr.f32.mxu0 0.0
  %286 = vmatmul.mubr.f32.gmra.mrb[0].mxu0 %v219
  %v287 = vpop.f32.mrb[0].mxu0
  %v288 = vadd.f32 0.0, %v287
  %v289 = vpop.f32.mrb[0].mxu0
  %290 = vdwg.mxu0
  %292 = vrot.lane.b32.xlu0 %v288, 16
  %v293 = vpop.permute.xlu0 %292
  %v295 = vsel %vm198, %v168, %v293
  %vm296 = vcmask 179200
  %v297 = vsel %vm296, %v295, 0.0
  %v298 = vld [vmem:[%s7] sm:$0xf]
  %v299 = vld [vmem:[%s7 + $0x4] sm:$0xf]
  %v300 = vld [vmem:[%s7 + $0x8] sm:$0xf]
  %v301 = vld [vmem:[%s8] sm:$0x1]
  %v302 = vpack.c.bf16 %v297, %v297
  %v304 = vlaneseq
  %v305 = vshrl.u32 %v304, 7
  %v306 = vsub.s32 0, %v305
  %v307 = vrot.slane %v301, %v306
  %v312 = vunpack.c.l.b16 %v298
  %v313 = vunpack.c.l.b16 %v299
  %v314 = vunpack.c.l.b16 %v300
  %v315 = vpack.c.b16 %v313, %v312
  %v316 = vpack.c.b16 %v314, %v314
  %vm318 = vcmask 195584
  %v320 = vsel %vm318, %v302, 0
  %v323 = vsel %vm55, %v316, 0
  %325 = vmatprep.subr.bf16.mxu0 0
  %326 = vmatpush1.bf16.msra.mxu0 %v315
  %327 = vmatprep.subr.bf16.mxu0 0
  %328 = vmatpush1.bf16.msra.mxu0 %v323
  %329 = vmatprep.subr.bf16.mxu0 0
  %330 = vmatpush1.bf16.msra.mxu0 0
  %331 = vmatprep.subr.bf16.mxu0 0
  %332 = vmatpush1.bf16.msra.mxu0 0
  %333 = vmatprep.subr.bf16.mxu0 0
  %334 = vmatpush1.bf16.msra.mxu0 0
  %335 = vmatprep.subr.bf16.mxu0 0
  %336 = vmatpush1.bf16.msra.mxu0 0
  %337 = vmatprep.subr.bf16.mxu0 0
  %338 = vmatpush1.bf16.msra.mxu0 0
  %339 = vmatprep.subr.bf16.mxu0 0
  %340 = vmatpush1.bf16.msra.mxu0 0
  %341 = vmatprep.subr.bf16.mxu0 0
  %342 = vmatpush1.bf16.msra.mxu0 0
  %343 = vmatprep.subr.bf16.mxu0 0
  %344 = vmatpush1.bf16.msra.mxu0 0
  %345 = vmatprep.subr.bf16.mxu0 0
  %346 = vmatpush1.bf16.msra.mxu0 0
  %347 = vmatprep.subr.bf16.mxu0 0
  %348 = vmatpush1.bf16.msra.mxu0 0
  %349 = vmatprep.subr.bf16.mxu0 0
  %350 = vmatpush1.bf16.msra.mxu0 0
  %351 = vmatprep.subr.bf16.mxu0 0
  %352 = vmatpush1.bf16.msra.mxu0 0
  %353 = vmatprep.subr.bf16.mxu0 0
  %354 = vmatpush1.bf16.msra.mxu0 0
  %355 = vmatprep.subr.bf16.mxu0 0
  %356 = vmatpush1.bf16.msra.mxu0 0
  %357 = vmatprep.mubr.bf16.mxu0 0
  %358 = vmatmul.mubr.bf16.gmra.mrb[0].mxu0 %v320
  %v359 = vpop.f32.mrb[0].mxu0
  %v360 = vadd.f32 %v307, %v359
  %v361 = vpop.f32.mrb[0].mxu0
  %v362 = vpop.f32.mrb[0].mxu0
  %v363 = vpop.f32.mrb[0].mxu0
  %364 = vdwg.mxu0
  %v365 = vmax.f32 %v360, 0.0
  %v366 = vld [vmem:[%s9] sm:$0x1]
  %v367 = vld [vmem:[#allocation2] sm:$0x1]
  %v369 = vlaneseq
  %v370 = vshrl.u32 %v369, 7
  %v371 = vsub.s32 0, %v370
  %v372 = vrot.slane %v366, %v371
  %v374 = vmul.f32 %v365, %v372
  %v375 = vsel %vm124, %v374, 0.0
  %376 = vadd.xlane.f32.xlu0 %v375
  %v377 = vpop.xlane.xlu0 %376
  %v379 = vlaneseq
  %v380 = vshrl.u32 %v379, 7
  %v381 = vsub.s32 0, %v380
  %v382 = vrot.slane %v367, %v381
  %v384 = vadd.f32 %v377, %v382
  %v385 = vxor.u32 %v384, 2147483648
  %v386 = vmul.f32 %v385, 1.442695
  %v387 = vpow.pop %v386
  %v388 = vadd.f32 %v387, 1.0
  %v389 = vrcp.pop %v388
  %v390 = vmul.f32 1.0, %v389
  %vm391 = vcmask 7168
  %392 = vst.msk [vmem:[%s11] sm:$0xff] %vm391, %v390
  // Predicated region
  $region46: #{dlrm_forward.3} parent=0 // pred_check
    _
  $region47: #{dlrm_forward.3} parent=0 // pred_check_branch
    %394 = sbr.rel (0) target = $region49
  $region48: #{dlrm_forward.3} parent=0 // pred_region
    _
  $region49: #{dlrm_forward.3} parent=0 // pred_fallthru
    _
  // Predicated region
  $region50: #{dlrm_forward.3} parent=0 // pred_check
    _
  $region51: #{dlrm_forward.3} parent=0 // pred_check_branch
    %396 = sbr.rel (0) target = $region53
  $region52: #{dlrm_forward.3} parent=0 // pred_region
    _
  $region53: #{dlrm_forward.3} parent=0 // pred_fallthru
    _

</llo_original>
